<compile_context>
chip_gen: v7x
topology: tpu7x:2x2x1
jax: 0.10.0
libtpu: 0.0.40
codegen_flags: <defaults>
</compile_context>

<pallas_src>
import functools

import jax
import jax.numpy as jnp
from jax.experimental import pallas as pl
from jax.experimental.pallas import tpu as pltpu


# ----------------------------- Pallas kernel -----------------------------

def _projblock_kernel(x_ref, wc_ref, we_ref, wb_ref, ba_ref, bo_ref, out_ref,
                      *, H, WCout):
    # x_ref  : (Mr, W*Cin)  f32        Mr = nb*H packed image rows (batch-major)
    # wc_ref : (W*Cin, 2*W*Cout) bf16  [conv_a center tap | identity|1x1-conv]
    # we_ref : (2, W*Cin, W*Cout) bf16 conv_a top / bottom H taps
    # wb_ref : (3*W*Cout, W*Cout) bf16 conv_b, three H taps stacked along K
    # ba_ref : (1, W*Cout) f32         conv_a bias (tiled over W)
    # bo_ref : (1, W*Cout) f32         combined output bias (b1 padded + bb)
    # out_ref: (Mr, W*Cout) f32        lane-dense output (128 lanes here)
    Mr = x_ref.shape[0]
    cdt = wc_ref.dtype  # MXU operand dtype (bf16)

    # Row index within its own image; boundary masks hoisted (reused for x, h).
    row = jax.lax.broadcasted_iota(jnp.int32, (Mr, 1), 0) % H
    not_top = row != 0          # row above exists within the same image
    not_bot = row != (H - 1)    # row below exists within the same image

    def neighbours(v):
        # v_dn[i] = v[i-1] (zero on first row of each image), v_up[i] = v[i+1].
        v_dn = jnp.where(not_top, pltpu.roll(v, shift=1, axis=0), 0.0)
        v_up = jnp.where(not_bot, pltpu.roll(v, shift=Mr - 1, axis=0), 0.0)
        return v_dn, v_up

    x = x_ref[...]
    x_dn, x_up = neighbours(x)

    # dot1: conv_a center tap fused with the [x | one_conv(x)] matmul (N=256
    # fills the full MXU output width on v6e/v7x).
    xc = jnp.dot(x.astype(cdt), wc_ref[...], preferred_element_type=jnp.float32)
    # dot2/3: conv_a H-edge taps (64-lane operands, left as two dots).
    he = jnp.dot(x_dn.astype(cdt), we_ref[0], preferred_element_type=jnp.float32)
    he = he + jnp.dot(x_up.astype(cdt), we_ref[1],
                      preferred_element_type=jnp.float32)

    # h = relu(conv_a(x) + ba); the lane-128 slice is at a vreg boundary (free).
    h = jnp.maximum(xc[:, :WCout] + he + ba_ref[...], 0.0)

    # dot4: all three conv_b H taps in one K = 3*W*Cout dot; concat pieces are
    # each exactly 128 lanes, so the lane-concat is at vreg boundaries.
    h_dn, h_up = neighbours(h)
    hcat = jnp.concatenate(
        [h_dn.astype(cdt), h.astype(cdt), h_up.astype(cdt)], axis=1)
    y2 = jnp.dot(hcat, wb_ref[...], preferred_element_type=jnp.float32)

    # out = x1 + conv_b(relu(conv_a(x))) + (b1_padded + bb)
    out_ref[...] = (xc[:, WCout:] + y2 + bo_ref[...]).astype(out_ref.dtype)


# ------------------------------ JAX wrapper ------------------------------

def _choose_images_per_block(N, H, target_rows=512, min_split_rows=128):
    """Images per grid block.  Small problems run as one block (v5e/v6e have a
    single TensorCore, and v7x megacore only pays once each core gets >=128
    rows); large batches tile into <=target_rows blocks that are image-aligned
    and 8-row divisible, preferring blocks of at least min_split_rows rows."""
    if N * H <= target_rows:
        return N
    cands = [nb for nb in range(1, N + 1)
             if N % nb == 0 and nb * H <= target_rows and (nb * H) % 8 == 0]
    good = [nb for nb in cands if nb * H >= min_split_rows]
    if good:
        return max(good)
    return max(cands) if cands else N


def proj_block_pallas_nhwc(x_nhwc, kp):
    """x_nhwc: (N, H, W, Cin) float32.  Returns (N, H, W, Cout) float32."""
    N, H, W, Cin = x_nhwc.shape
    WCin = W * Cin
    WCout = kp["ba"].shape[1]
    Cout = WCout // W

    # NHWC already has W and C adjacent: packing to rows is a pure reshape.
    x2d = x_nhwc.reshape(N * H, WCin)

    nb = _choose_images_per_block(N, H)
    grid = (pl.cdiv(N, nb),)
    Mr = nb * H
    assert Mr % H == 0 and grid[0] * nb == N, (
        "blocks must start at image boundaries (row % H masking assumes it)")

    wc, we, wb, ba, bo = kp["wc"], kp["wedge"], kp["wbt"], kp["ba"], kp["bo"]

    # VMEM budget (the pipeline double-buffers inputs/outputs by default).
    wbytes = (wc.size + we.size + wb.size) * wc.dtype.itemsize \
             + (ba.size + bo.size) * 4
    blk_bytes = Mr * (WCin * 4 + WCout * 4)
    vmem_est = 2 * (wbytes + blk_bytes)
    # TODO(synk): for W*Cout ~>= 1.5k, tile the Toeplitz weights along the
    # output axis (or fall back to direct 9-tap dots) instead of refusing; the
    # (W*Cout)^2 weights outgrow v7x's 64 MiB VMEM long before v5e/v6e's 128 MiB.
    if vmem_est > 24 * 1024 * 1024:
        raise NotImplementedError(
            f"Toeplitz weight set (~{vmem_est / 2**20:.1f} MiB est.) exceeds the "
            "single-block VMEM budget; needs output-axis weight tiling.")
    vmem_limit = int(min(60 * 1024 * 1024,
                         max(32 * 1024 * 1024, 2 * vmem_est)))

    flops = 2 * N * H * (WCin * 2 * WCout + 2 * WCin * WCout
                         + 3 * WCout * WCout)
    bytes_accessed = int(x2d.size * 4 + N * H * WCout * 4 + grid[0] * wbytes)
    cost = pl.CostEstimate(flops=flops, transcendentals=0,
                           bytes_accessed=bytes_accessed)

    kernel = functools.partial(_projblock_kernel, H=H, WCout=WCout)
    out_shape = jax.ShapeDtypeStruct((N * H, WCout), jnp.float32)

    def const_spec(arr, single_buffer):
        idx = (lambda i: (0, 0, 0)) if arr.ndim == 3 else (lambda i: (0, 0))
        if single_buffer:
            return pl.BlockSpec(arr.shape, idx, pipeline_mode=pl.Buffered(1))
        return pl.BlockSpec(arr.shape, idx)

    def run(single_buffer_weights):
        in_specs = [pl.BlockSpec((Mr, WCin), lambda i: (i, 0))] + [
            const_spec(a, single_buffer_weights) for a in (wc, we, wb, ba, bo)
        ]
        return pl.pallas_call(
            kernel,
            out_shape=out_shape,
            grid_spec=pltpu.PrefetchScalarGridSpec(
                num_scalar_prefetch=0,
                grid=grid,
                in_specs=in_specs,
                out_specs=pl.BlockSpec((Mr, WCout), lambda i: (i, 0)),
            ),
            compiler_params=pltpu.CompilerParams(
                dimension_semantics=("parallel",),
                vmem_limit_bytes=vmem_limit,
            ),
            cost_estimate=cost,
        )(x2d, wc, we, wb, ba, bo)

    # Only single-buffer the constant weights when the grid actually iterates;
    # fall back to default double-buffering if the compiler rejects it.
    want_single = grid[0] > 1 and hasattr(pl, "Buffered")
    if want_single:
        try:
            out2d = run(True)
        except Exception:
            out2d = run(False)
    else:
        out2d = run(False)

    return out2d.reshape(N, H, W, Cout)


def proj_block_pallas(x_nchw, kp):
    """NCHW entry point matching the PyTorch module: (N,Cin,H,W)->(N,Cout,H,W)."""
    # TODO(synk): keep the surrounding model in NHWC to drop these two layout
    # transposes — they move ~3x the kernel's HBM bytes and are pure plumbing.
    x_nhwc = jnp.transpose(x_nchw, (0, 2, 3, 1))
    out_nhwc = proj_block_pallas_nhwc(x_nhwc, kp)
    return jnp.transpose(out_nhwc, (0, 3, 1, 2))


# -------------------- parameter setup (plain-JAX glue) --------------------

def spectral_normalize(w_oihw):
    # PyTorch spectral_norm divides W by its largest singular value (power
    # iteration); we use the exact SVD at setup time.
    m = w_oihw.reshape(w_oihw.shape[0], -1)
    sigma = jnp.linalg.svd(m, compute_uv=False)[0]
    return w_oihw / sigma


def _band_toeplitz(w_row, W):
    """w_row: (K, Ci, Co) taps along W (cross-correlation, 'SAME' padding).
    Returns (W*Ci, W*Co) banded block-Toeplitz T so that, with rows packed as
    (..., W*Ci)/(..., W*Co), y = x @ T is the 1-D 'SAME' conv along W."""
    K, Ci, Co = w_row.shape
    center = (K - 1) // 2
    T = jnp.zeros((W, Ci, W, Co), w_row.dtype)
    for dj in range(K):
        sel = jnp.eye(W, W, k=center - dj, dtype=w_row.dtype)
        T = T + sel[:, None, :, None] * w_row[dj][None, :, None, :]
    return T.reshape(W * Ci, W * Co)


def pack_kernel_params(p, W, weight_dtype=jnp.bfloat16):
    """Pack OIHW params into the kernel's fused banded-Toeplitz (bf16) layout."""
    Cout, Cin = p["wa"].shape[0], p["wa"].shape[1]

    # x1 = [x | one_conv(x)] per pixel  ==  x_pixel @ [I_Cin | W1^T]
    m1 = jnp.concatenate(
        [jnp.eye(Cin, dtype=jnp.float32), p["w1"][:, :, 0, 0].T], axis=1)
    t1 = _band_toeplitz(m1[None], W)                         # (W*Cin, W*Cout)

    wa_hwio = jnp.transpose(p["wa"], (2, 3, 1, 0))           # (3,3,Cin,Cout)
    wb_hwio = jnp.transpose(p["wb"], (2, 3, 1, 0))           # (3,3,Cout,Cout)
    ta = [_band_toeplitz(wa_hwio[d], W) for d in range(3)]   # (W*Cin, W*Cout) x3
    tb = [_band_toeplitz(wb_hwio[d], W) for d in range(3)]   # (W*Cout,W*Cout) x3

    wc = jnp.concatenate([ta[1], t1], axis=1)                # (W*Cin, 2*W*Cout)
    wedge = jnp.stack([ta[0], ta[2]])                        # (2, W*Cin, W*Cout)
    wbt = jnp.concatenate(tb, axis=0)                        # (3*W*Cout, W*Cout)

    ba = jnp.tile(p["ba"], W)[None].astype(jnp.float32)
    b1_pad = jnp.concatenate([jnp.zeros((Cin,), jnp.float32), p["b1"]])
    bo = (jnp.tile(b1_pad, W) + jnp.tile(p["bb"], W))[None].astype(jnp.float32)

    return dict(wc=wc.astype(weight_dtype), wedge=wedge.astype(weight_dtype),
                wbt=wbt.astype(weight_dtype), ba=ba, bo=bo)


def make_params(key, in_channels, out_channels):
    Cin, Cout = in_channels, out_channels
    ks = jax.random.split(key, 6)
    w1 = spectral_normalize(
        jax.random.normal(ks[0], (Cout - Cin, Cin, 1, 1), jnp.float32) * 0.5)
    b1 = jax.random.normal(ks[1], (Cout - Cin,), jnp.float32) * 0.1
    wa = spectral_normalize(
        jax.random.normal(ks[2], (Cout, Cin, 3, 3), jnp.float32) * 0.5)
    ba = jax.random.normal(ks[3], (Cout,), jnp.float32) * 0.1
    wb = spectral_normalize(
        jax.random.normal(ks[4], (Cout, Cout, 3, 3), jnp.float32) * 0.5)
    bb = jax.random.normal(ks[5], (Cout,), jnp.float32) * 0.1
    return dict(w1=w1, b1=b1, wa=wa, ba=ba, wb=wb, bb=bb)


def ref_forward(x_nchw, p):
    """Pure-JAX f32 reference of the PyTorch forward (NCHW / OIHW)."""
    dn = ("NCHW", "OIHW", "NCHW")
    y1 = jax.lax.conv_general_dilated(x_nchw, p["w1"], (1, 1), "VALID",
                                      dimension_numbers=dn) \
        + p["b1"][None, :, None, None]
    x1 = jnp.concatenate([x_nchw, y1], axis=1)
    h = jax.lax.conv_general_dilated(x_nchw, p["wa"], (1, 1), "SAME",
                                     dimension_numbers=dn) \
        + p["ba"][None, :, None, None]
    h = jnp.maximum(h, 0.0)
    y2 = jax.lax.conv_general_dilated(h, p["wb"], (1, 1), "SAME",
                                      dimension_numbers=dn) \
        + p["bb"][None, :, None, None]
    return x1 + y2


if __name__ == "__main__":
    key = jax.random.PRNGKey(0)
    k_x, k_p = jax.random.split(key)

    N, Cin, Cout, H, W = 2, 4, 8, 16, 16
    x = jax.random.normal(k_x, (N, Cin, H, W), jnp.float32)
    params = make_params(k_p, Cin, Cout)
    kparams = pack_kernel_params(params, W)

    out = jax.block_until_ready(proj_block_pallas(x, kparams))
    ref = jax.block_until_ready(ref_forward(x, params))

    assert out.shape == (N, Cout, H, W), out.shape
    max_err = float(jnp.max(jnp.abs(out - ref)))
    # bf16 MXU operands with f32 accumulation -> ~1e-2-class error vs f32 ref.
    assert jnp.allclose(out, ref, atol=5e-2, rtol=5e-2), max_err

    print("KERNEL_OK")
</pallas_src>

<mosaic_0001>
module attributes {stable_mosaic.version = 11 : i64} {
  func.func @_projblock_kernel(%arg0: i32, %arg1: memref<32x64xf32, #tpu.memory_space<vmem>>, %arg2: memref<64x256xbf16, #tpu.memory_space<vmem>>, %arg3: memref<2x64x128xbf16, #tpu.memory_space<vmem>>, %arg4: memref<384x128xbf16, #tpu.memory_space<vmem>>, %arg5: memref<1x128xf32, #tpu.memory_space<vmem>>, %arg6: memref<1x128xf32, #tpu.memory_space<vmem>>, %arg7: memref<32x128xf32, #tpu.memory_space<vmem>>) attributes {dimension_semantics = [#tpu.dimension_semantics<parallel>], iteration_bounds = array<i64: 1>, scalar_prefetch = 0 : i64, scratch_operands = 0 : i64, tpu.core_type = #tpu.core_type<tc>, window_params = [{transform_indices = @transform_0, window_bounds = array<i64: 32, 64>}, {pipeline_mode = #tpu.pipeline_mode<synchronous>, transform_indices = @transform_1, window_bounds = array<i64: 64, 256>}, {pipeline_mode = #tpu.pipeline_mode<synchronous>, transform_indices = @transform_2, window_bounds = array<i64: 2, 64, 128>}, {pipeline_mode = #tpu.pipeline_mode<synchronous>, transform_indices = @transform_3, window_bounds = array<i64: 384, 128>}, {pipeline_mode = #tpu.pipeline_mode<synchronous>, transform_indices = @transform_4, window_bounds = array<i64: 1, 128>}, {pipeline_mode = #tpu.pipeline_mode<synchronous>, transform_indices = @transform_5, window_bounds = array<i64: 1, 128>}, {transform_indices = @transform_6, window_bounds = array<i64: 32, 128>}]} {
    %0 = tpu.iota {dimensions = array<i32: 0>} : vector<32x1xi32>
    %c16_i32 = arith.constant 16 : i32
    %c0_i32 = arith.constant 0 : i32
    %1 = arith.cmpi eq, %c16_i32, %c0_i32 : i32
    %c1_i32 = arith.constant 1 : i32
    %2 = arith.select %1, %c1_i32, %c16_i32 : i32
    %3 = vector.broadcast %2 : i32 to vector<32x1xi32>
    %4 = arith.remsi %0, %3 : vector<32x1xi32>
    %c0_i32_0 = arith.constant 0 : i32
    %5 = vector.broadcast %c0_i32_0 : i32 to vector<32x1xi32>
    %6 = arith.cmpi ne, %4, %5 : vector<32x1xi32>
    %c0_i32_1 = arith.constant 0 : i32
    %7 = vector.broadcast %c0_i32_1 : i32 to vector<32x1xi32>
    %8 = arith.cmpi slt, %4, %7 : vector<32x1xi32>
    %c0_i32_2 = arith.constant 0 : i32
    %9 = arith.cmpi slt, %2, %c0_i32_2 : i32
    %10 = vector.broadcast %9 : i1 to vector<32x1xi1>
    %11 = vector.broadcast %10 : vector<32x1xi1> to vector<32x1xi1>
    %12 = arith.xori %8, %11 : vector<32x1xi1>
    %13 = arith.andi %12, %6 : vector<32x1xi1>
    %14 = vector.broadcast %2 : i32 to vector<32x1xi32>
    %15 = arith.addi %4, %14 : vector<32x1xi32>
    %16 = arith.select %13, %15, %4 : vector<32x1xi1>, vector<32x1xi32>
    %c0_i32_3 = arith.constant 0 : i32
    %17 = vector.broadcast %c0_i32_3 : i32 to vector<32x1xi32>
    %18 = arith.cmpi ne, %16, %17 : vector<32x1xi32>
    %c15_i32 = arith.constant 15 : i32
    %19 = vector.broadcast %c15_i32 : i32 to vector<32x1xi32>
    %20 = arith.cmpi ne, %16, %19 : vector<32x1xi32>
    %c0 = arith.constant 0 : index
    %c0_4 = arith.constant 0 : index
    %21 = vector.load %arg1[%c0, %c0_4] : memref<32x64xf32, #tpu.memory_space<vmem>>, vector<32x64xf32>
    %c1_i32_5 = arith.constant 1 : i32
    %22 = tpu.dynamic_rotate %21 by %c1_i32_5 dim 0 : vector<32x64xf32>, i32 -> vector<32x64xf32>
    %cst = arith.constant 0.000000e+00 : f32
    %23 = vector.shape_cast %18 : vector<32x1xi1> to vector<32x1xi1>
    %24 = vector.broadcast %23 : vector<32x1xi1> to vector<32x64xi1>
    %25 = vector.broadcast %cst : f32 to vector<32x64xf32>
    %26 = arith.select %24, %22, %25 : vector<32x64xi1>, vector<32x64xf32>
    %c31_i32 = arith.constant 31 : i32
    %27 = tpu.dynamic_rotate %21 by %c31_i32 dim 0 : vector<32x64xf32>, i32 -> vector<32x64xf32>
    %cst_6 = arith.constant 0.000000e+00 : f32
    %28 = vector.shape_cast %20 : vector<32x1xi1> to vector<32x1xi1>
    %29 = vector.broadcast %28 : vector<32x1xi1> to vector<32x64xi1>
    %30 = vector.broadcast %cst_6 : f32 to vector<32x64xf32>
    %31 = arith.select %29, %27, %30 : vector<32x64xi1>, vector<32x64xf32>
    %32 = arith.truncf %21 : vector<32x64xf32> to vector<32x64xbf16>
    %c0_7 = arith.constant 0 : index
    %c0_8 = arith.constant 0 : index
    %33 = vector.load %arg2[%c0_7, %c0_8] : memref<64x256xbf16, #tpu.memory_space<vmem>>, vector<64x256xbf16>
    %cst_9 = arith.constant dense<0.000000e+00> : vector<32x256xf32>
    %34 = tpu.matmul %32, %33, %cst_9 {dimension_numbers = #tpu.dot_dimension_numbers<[1], [0], [0], [1], [0, 0, 1, 1], [], []>} : vector<32x64xbf16>, vector<64x256xbf16>, vector<32x256xf32> -> vector<32x256xf32>
    %35 = arith.truncf %26 : vector<32x64xf32> to vector<32x64xbf16>
    %c0_10 = arith.constant 0 : index
    %c0_11 = arith.constant 0 : index
    %c0_12 = arith.constant 0 : index
    %36 = vector.load %arg3[%c0_10, %c0_11, %c0_12] : memref<2x64x128xbf16, #tpu.memory_space<vmem>>, vector<1x64x128xbf16>
    %37 = vector.shape_cast %36 : vector<1x64x128xbf16> to vector<64x128xbf16>
    %cst_13 = arith.constant dense<0.000000e+00> : vector<32x128xf32>
    %38 = tpu.matmul %35, %37, %cst_13 {dimension_numbers = #tpu.dot_dimension_numbers<[1], [0], [0], [1], [0, 0, 1, 1], [], []>} : vector<32x64xbf16>, vector<64x128xbf16>, vector<32x128xf32> -> vector<32x128xf32>
    %39 = arith.truncf %31 : vector<32x64xf32> to vector<32x64xbf16>
    %c1 = arith.constant 1 : index
    %c0_14 = arith.constant 0 : index
    %c0_15 = arith.constant 0 : index
    %40 = vector.load %arg3[%c1, %c0_14, %c0_15] : memref<2x64x128xbf16, #tpu.memory_space<vmem>>, vector<1x64x128xbf16>
    %41 = vector.shape_cast %40 : vector<1x64x128xbf16> to vector<64x128xbf16>
    %cst_16 = arith.constant dense<0.000000e+00> : vector<32x128xf32>
    %42 = tpu.matmul %39, %41, %cst_16 {dimension_numbers = #tpu.dot_dimension_numbers<[1], [0], [0], [1], [0, 0, 1, 1], [], []>} : vector<32x64xbf16>, vector<64x128xbf16>, vector<32x128xf32> -> vector<32x128xf32>
    %43 = arith.addf %38, %42 : vector<32x128xf32>
    %44 = vector.extract_strided_slice %34 {offsets = [0, 0], sizes = [32, 128], strides = [1, 1]} : vector<32x256xf32> to vector<32x128xf32>
    %45 = arith.addf %44, %43 : vector<32x128xf32>
    %c0_17 = arith.constant 0 : index
    %c0_18 = arith.constant 0 : index
    %46 = vector.load %arg5[%c0_17, %c0_18] : memref<1x128xf32, #tpu.memory_space<vmem>>, vector<1x128xf32>
    %47 = vector.broadcast %46 : vector<1x128xf32> to vector<32x128xf32>
    %48 = arith.addf %45, %47 : vector<32x128xf32>
    %cst_19 = arith.constant 0.000000e+00 : f32
    %49 = vector.broadcast %cst_19 : f32 to vector<32x128xf32>
    %50 = arith.maximumf %48, %49 : vector<32x128xf32>
    %c1_i32_20 = arith.constant 1 : i32
    %51 = tpu.dynamic_rotate %50 by %c1_i32_20 dim 0 : vector<32x128xf32>, i32 -> vector<32x128xf32>
    %cst_21 = arith.constant 0.000000e+00 : f32
    %52 = vector.shape_cast %18 : vector<32x1xi1> to vector<32x1xi1>
    %53 = vector.broadcast %52 : vector<32x1xi1> to vector<32x128xi1>
    %54 = vector.broadcast %cst_21 : f32 to vector<32x128xf32>
    %55 = arith.select %53, %51, %54 : vector<32x128xi1>, vector<32x128xf32>
    %c31_i32_22 = arith.constant 31 : i32
    %56 = tpu.dynamic_rotate %50 by %c31_i32_22 dim 0 : vector<32x128xf32>, i32 -> vector<32x128xf32>
    %cst_23 = arith.constant 0.000000e+00 : f32
    %57 = vector.shape_cast %20 : vector<32x1xi1> to vector<32x1xi1>
    %58 = vector.broadcast %57 : vector<32x1xi1> to vector<32x128xi1>
    %59 = vector.broadcast %cst_23 : f32 to vector<32x128xf32>
    %60 = arith.select %58, %56, %59 : vector<32x128xi1>, vector<32x128xf32>
    %61 = arith.truncf %55 : vector<32x128xf32> to vector<32x128xbf16>
    %62 = arith.truncf %50 : vector<32x128xf32> to vector<32x128xbf16>
    %63 = arith.truncf %60 : vector<32x128xf32> to vector<32x128xbf16>
    %64 = tpu.concatenate %61, %62, %63 in 1 : vector<32x128xbf16>, vector<32x128xbf16>, vector<32x128xbf16> -> vector<32x384xbf16>
    %c0_24 = arith.constant 0 : index
    %c0_25 = arith.constant 0 : index
    %65 = vector.load %arg4[%c0_24, %c0_25] : memref<384x128xbf16, #tpu.memory_space<vmem>>, vector<384x128xbf16>
    %cst_26 = arith.constant dense<0.000000e+00> : vector<32x128xf32>
    %66 = tpu.matmul %64, %65, %cst_26 {dimension_numbers = #tpu.dot_dimension_numbers<[1], [0], [0], [1], [0, 0, 1, 1], [], []>} : vector<32x384xbf16>, vector<384x128xbf16>, vector<32x128xf32> -> vector<32x128xf32>
    %67 = vector.extract_strided_slice %34 {offsets = [0, 128], sizes = [32, 128], strides = [1, 1]} : vector<32x256xf32> to vector<32x128xf32>
    %68 = arith.addf %67, %66 : vector<32x128xf32>
    %c0_27 = arith.constant 0 : index
    %c0_28 = arith.constant 0 : index
    %69 = vector.load %arg6[%c0_27, %c0_28] : memref<1x128xf32, #tpu.memory_space<vmem>>, vector<1x128xf32>
    %70 = vector.broadcast %69 : vector<1x128xf32> to vector<32x128xf32>
    %71 = arith.addf %68, %70 : vector<32x128xf32>
    %c0_29 = arith.constant 0 : index
    %c0_30 = arith.constant 0 : index
    %72 = vector.load %arg7[%c0_29, %c0_30] : memref<32x128xf32, #tpu.memory_space<vmem>>, vector<32x128xf32>
    tpu.vector_store %arg7[%c0_29, %c0_30], %71 {strides = array<i32>} : memref<32x128xf32, #tpu.memory_space<vmem>>, vector<32x128xf32>,
    return
  }
  func.func @transform_0(%arg0: i32) -> (i32, i32) {
    %c0_i32 = arith.constant 0 : i32
    %c0_i32_0 = arith.constant 0 : i32
    return %arg0, %c0_i32 : i32, i32
  }
  func.func @transform_1(%arg0: i32) -> (i32, i32) {
    %c0_i32 = arith.constant 0 : i32
    %c0_i32_0 = arith.constant 0 : i32
    %c0_i32_1 = arith.constant 0 : i32
    return %c0_i32, %c0_i32_0 : i32, i32
  }
  func.func @transform_2(%arg0: i32) -> (i32, i32, i32) {
    %c0_i32 = arith.constant 0 : i32
    %c0_i32_0 = arith.constant 0 : i32
    %c0_i32_1 = arith.constant 0 : i32
    %c0_i32_2 = arith.constant 0 : i32
    return %c0_i32, %c0_i32_0, %c0_i32_1 : i32, i32, i32
  }
  func.func @transform_3(%arg0: i32) -> (i32, i32) {
    %c0_i32 = arith.constant 0 : i32
    %c0_i32_0 = arith.constant 0 : i32
    %c0_i32_1 = arith.constant 0 : i32
    return %c0_i32, %c0_i32_0 : i32, i32
  }
  func.func @transform_4(%arg0: i32) -> (i32, i32) {
    %c0_i32 = arith.constant 0 : i32
    %c0_i32_0 = arith.constant 0 : i32
    %c0_i32_1 = arith.constant 0 : i32
    return %c0_i32, %c0_i32_0 : i32, i32
  }
  func.func @transform_5(%arg0: i32) -> (i32, i32) {
    %c0_i32 = arith.constant 0 : i32
    %c0_i32_0 = arith.constant 0 : i32
    %c0_i32_1 = arith.constant 0 : i32
    return %c0_i32, %c0_i32_0 : i32, i32
  }
  func.func @transform_6(%arg0: i32) -> (i32, i32) {
    %c0_i32 = arith.constant 0 : i32
    %c0_i32_0 = arith.constant 0 : i32
    return %arg0, %c0_i32 : i32, i32
  }
}

</mosaic_0001>

<llo_original>
// kernel: tpu_custom_call.1
$region0: #{tpu_custom_call.1}
  #allocation0 [shape = 'u32[]', space=smem, size = 0x4, offset = 0x4, fixed_abs, tag = 'smem constant byte address 0x4 - core index']
  #allocation1 [shape = 'u32[144,128]{1,0:T(1,128)}', space=vmem, size = 0x12000, scoped, tag = 'internal scratch']
  %s0 = inlined_call_operand.hbm [shape: f32[32,64], index: 0, kind: input, shape index: {}]
  %s1 = inlined_call_operand.hbm [shape: bf16[64,256], index: 1, kind: input, shape index: {}]
  %s2 = inlined_call_operand.hbm [shape: bf16[2,64,128], index: 2, kind: input, shape index: {}]
  %s3 = inlined_call_operand.hbm [shape: bf16[384,128], index: 3, kind: input, shape index: {}]
  %s4 = inlined_call_operand.vmem [shape: f32[1,128], index: 4, kind: input, shape index: {}]
  %s5 = inlined_call_operand.vmem [shape: f32[1,128], index: 5, kind: input, shape index: {}]
  %s6 = inlined_call_operand.hbm [shape: f32[32,128], index: 6, kind: output, shape index: {}]
  %s7 = sld [smem:[#allocation0]]
  $region50: #{tpu_custom_call.1} parent=0
    _
  %s9 = ssub.s32 1, %s7
  %s10 = scalar_select 0, %s9, %s7
  $region1: #{tpu_custom_call.1} parent=0
    #allocation2 [shape = 'u8[16384]{0}', space=vmem, size = 0x4000, scoped, tag = 'input window, operand 0, single buffered']
    #allocation3 [shape = 's32[1]{0}', space=sflag, size = 0x4, scoped, tag = 'scoped memory for tpu_custom_call.1']
    #allocation4 [shape = 's32[1]{0}', space=sflag, size = 0x4, scoped, tag = 'scoped memory for tpu_custom_call.1']
    #allocation5 [shape = 'u8[32768]{0}', space=vmem, size = 0x8000, scoped, tag = 'input window, operand 1, single buffered']
    #allocation6 [shape = 's32[1]{0}', space=sflag, size = 0x4, scoped, tag = 'scoped memory for tpu_custom_call.1']
    #allocation7 [shape = 'u8[32768]{0}', space=vmem, size = 0x8000, scoped, tag = 'input window, operand 2, single buffered']
    #allocation8 [shape = 'u8[98304]{0}', space=vmem, size = 0x18000, scoped, tag = 'input window, operand 3, single buffered']
    #allocation9 [shape = 's32[1]{0}', space=sflag, size = 0x4, scoped, tag = 'scoped memory for tpu_custom_call.1']
    #allocation10 [shape = 'u8[16384]{0}', space=vmem, size = 0x4000, scoped, tag = 'output window, operand 0, single buffered']
    %11 = vsyncpa [#allocation3], 0
    %12 = vsyncpa [#allocation6], 0
    %13 = vsyncpa [#allocation9], 0
    %14 = vsyncpa [#allocation4], 0
    // Predicated region
    $region2: #{tpu_custom_call.1} parent=1 // pred_check
      _
    $region3: #{tpu_custom_call.1} parent=1 // pred_check_branch
      %16 = sbr.rel (0) target = $region5
    $region4: #{tpu_custom_call.1} parent=1 // pred_region
      %s18 = ssub.s32 512, 512
      %19 = vsyncadd [#allocation3], %s18
      %s20 = sshll.u32 [#allocation2], 4
      %s21 = int_to_ptr.vmem [resolvable:$true] %s20
      %26 = dma.hbm_to_vmem [thread:$0]  %s0, 512, %s21, [#allocation3], 128, 128, 8
    $region5: #{tpu_custom_call.1} parent=1 // pred_fallthru
      _
    // Predicated region
    $region6: #{tpu_custom_call.1} parent=1 // pred_check
      _
    $region7: #{tpu_custom_call.1} parent=1 // pred_check_branch
      %28 = sbr.rel (0) target = $region9
    $region8: #{tpu_custom_call.1} parent=1 // pred_region
      %s30 = ssub.s32 1024, 1024
      %31 = vsyncadd [#allocation6], %s30
      %s32 = sshll.u32 [#allocation5], 4
      %s33 = int_to_ptr.vmem [resolvable:$true] %s32
      %38 = dma.hbm_to_vmem [thread:$0]  %s1, 1024, %s33, [#allocation6], 128, 128, 8
    $region9: #{tpu_custom_call.1} parent=1 // pred_fallthru
      _
    // Predicated region
    $region10: #{tpu_custom_call.1} parent=1 // pred_check
      _
    $region11: #{tpu_custom_call.1} parent=1 // pred_check_branch
      %40 = sbr.rel (0) target = $region13
    $region12: #{tpu_custom_call.1} parent=1 // pred_region
      %s42 = ssub.s32 1024, 1024
      %43 = vsyncadd [#allocation6], %s42
      %s44 = sshll.u32 [#allocation7], 4
      %s45 = int_to_ptr.vmem [resolvable:$true] %s44
      %50 = dma.hbm_to_vmem [thread:$0]  %s2, 1024, %s45, [#allocation6], 64, 64, 4
    $region13: #{tpu_custom_call.1} parent=1 // pred_fallthru
      _
    // Predicated region
    $region14: #{tpu_custom_call.1} parent=1 // pred_check
      _
    $region15: #{tpu_custom_call.1} parent=1 // pred_check_branch
      %52 = sbr.rel (0) target = $region17
    $region16: #{tpu_custom_call.1} parent=1 // pred_region
      %s54 = ssub.s32 3072, 3072
      %55 = vsyncadd [#allocation9], %s54
      %s56 = sshll.u32 [#allocation8], 4
      %s57 = int_to_ptr.vmem [resolvable:$true] %s56
      %62 = dma.hbm_to_vmem [thread:$0]  %s3, 3072, %s57, [#allocation9], 64, 64, 4
    $region17: #{tpu_custom_call.1} parent=1 // pred_fallthru
      _
    // Predicated region
    $region18: #{tpu_custom_call.1} parent=1 // pred_check
      _
    $region19: #{tpu_custom_call.1} parent=1 // pred_check_branch
      %64 = sbr.rel (0) target = $region21
    $region20: #{tpu_custom_call.1} parent=1 // pred_region
      _
    $region21: #{tpu_custom_call.1} parent=1 // pred_fallthru
      _
    // Predicated region
    $region22: #{tpu_custom_call.1} parent=1 // pred_check
      _
    $region23: #{tpu_custom_call.1} parent=1 // pred_check_branch
      %66 = sbr.rel (0) target = $region25
    $region24: #{tpu_custom_call.1} parent=1 // pred_region
      _
    $region25: #{tpu_custom_call.1} parent=1 // pred_fallthru
      _
    // Predicated region
    $region26: #{tpu_custom_call.1} parent=1 // pred_check
      _
    $region27: #{tpu_custom_call.1} parent=1 // pred_check_branch
      %68 = sbr.rel (0) target = $region29
    $region28: #{tpu_custom_call.1} parent=1 // pred_region
      %69 = dma.done [#allocation3], 512
    $region29: #{tpu_custom_call.1} parent=1 // pred_fallthru
      _
    // Predicated region
    $region30: #{tpu_custom_call.1} parent=1 // pred_check
      _
    $region31: #{tpu_custom_call.1} parent=1 // pred_check_branch
      %71 = sbr.rel (0) target = $region33
    $region32: #{tpu_custom_call.1} parent=1 // pred_region
      %72 = dma.done [#allocation6], 1024
    $region33: #{tpu_custom_call.1} parent=1 // pred_fallthru
      _
    // Predicated region
    $region34: #{tpu_custom_call.1} parent=1 // pred_check
      _
    $region35: #{tpu_custom_call.1} parent=1 // pred_check_branch
      %74 = sbr.rel (0) target = $region37
    $region36: #{tpu_custom_call.1} parent=1 // pred_region
      %75 = dma.done [#allocation6], 1024
    $region37: #{tpu_custom_call.1} parent=1 // pred_fallthru
      _
    // Predicated region
    $region38: #{tpu_custom_call.1} parent=1 // pred_check
      _
    $region39: #{tpu_custom_call.1} parent=1 // pred_check_branch
      %77 = sbr.rel (0) target = $region41
    $region40: #{tpu_custom_call.1} parent=1 // pred_region
      %78 = dma.done [#allocation9], 3072
    $region41: #{tpu_custom_call.1} parent=1 // pred_fallthru
      _
    %v80 = vlaneseq
    %v81 = vshrl.u32 %v80, 7
    %v82 = vadd.s32 %v81, 8
    %v83 = vadd.s32 %v81, 16
    %v84 = vadd.s32 %v81, 24
    %vm85 = vcmp.lt.s32.totalorder %v81, 0
    %v86 = vsub.s32 0, %v81
    %v87 = vsel %vm85, %v86, %v81
    %v88 = vshrl.u32 %v87, 4
    %v89 = vand.u32 %v87, 15
    %v90 = vsub.s32 0, %v89
    %v91 = vsel %vm85, %v90, %v89
    %vm92 = vcmp.lt.s32.totalorder %v82, 0
    %v93 = vsub.s32 0, %v82
    %v94 = vsel %vm92, %v93, %v82
    %v95 = vshrl.u32 %v94, 4
    %v96 = vand.u32 %v94, 15
    %v97 = vsub.s32 0, %v96
    %v98 = vsel %vm92, %v97, %v96
    %vm99 = vcmp.lt.s32.totalorder %v83, 0
    %v100 = vsub.s32 0, %v83
    %v101 = vsel %vm99, %v100, %v83
    %v102 = vshrl.u32 %v101, 4
    %v103 = vand.u32 %v101, 15
    %v104 = vsub.s32 0, %v103
    %v105 = vsel %vm99, %v104, %v103
    %vm106 = vcmp.lt.s32.totalorder %v84, 0
    %v107 = vsub.s32 0, %v84
    %v108 = vsel %vm106, %v107, %v84
    %v109 = vshrl.u32 %v108, 4
    %v110 = vand.u32 %v108, 15
    %v111 = vsub.s32 0, %v110
    %v112 = vsel %vm106, %v111, %v110
    %vm113 = vcmp.ne.s32.totalorder %v91, 0
    %vm114 = vcmp.ne.s32.totalorder %v98, 0
    %vm115 = vcmp.ne.s32.totalorder %v105, 0
    %vm116 = vcmp.ne.s32.totalorder %v112, 0
    %vm117 = vcmp.lt.s32.totalorder %v91, 0
    %vm118 = vcmp.lt.s32.totalorder %v98, 0
    %vm119 = vcmp.lt.s32.totalorder %v105, 0
    %vm120 = vcmp.lt.s32.totalorder %v112, 0
    %vm121 = vmand %vm117, %vm113
    %vm122 = vmand %vm118, %vm114
    %vm123 = vmand %vm119, %vm115
    %vm124 = vmand %vm120, %vm116
    %v125 = vadd.s32 %v91, 16
    %v126 = vadd.s32 %v98, 16
    %v127 = vadd.s32 %v105, 16
    %v128 = vadd.s32 %v112, 16
    %v129 = vsel %vm121, %v125, %v91
    %v130 = vsel %vm122, %v126, %v98
    %v131 = vsel %vm123, %v127, %v105
    %v132 = vsel %vm124, %v128, %v112
    %vm133 = vcmp.ne.s32.totalorder %v129, 0
    %vm134 = vcmp.ne.s32.totalorder %v130, 0
    %vm135 = vcmp.ne.s32.totalorder %v131, 0
    %vm136 = vcmp.ne.s32.totalorder %v132, 0
    %vm137 = vcmp.ne.s32.totalorder %v129, 15
    %vm138 = vcmp.ne.s32.totalorder %v130, 15
    %vm139 = vcmp.ne.s32.totalorder %v131, 15
    %vm140 = vcmp.ne.s32.totalorder %v132, 15
    %v141 = vld [vmem:[#allocation2] sm:$0xff]
    %v142 = vld [vmem:[#allocation2 + $0x8] sm:$0xff]
    %v143 = vld [vmem:[#allocation2 + $0x10] sm:$0xff]
    %v144 = vld [vmem:[#allocation2 + $0x18] sm:$0xff]
    %v145 = vrot.slane %v141, 7
    %v146 = vrot.slane %v142, 7
    %v147 = vrot.slane %v143, 7
    %v148 = vrot.slane %v144, 7
    %vm149 = vcmp.lt.s32.totalorder %v81, 1
    %v150 = vsel %vm149, %v147, %v148
    %v151 = vsel %vm149, %v146, %v147
    %v152 = vsel %vm149, %v145, %v146
    %v153 = vsel %vm149, %v148, %v145
    %v154 = vsel %vm133, 1, 0
    %v155 = vsel %vm134, 1, 0
    %v156 = vsel %vm135, 1, 0
    %v157 = vsel %vm136, 1, 0
    %vm158 = vcmp.eq.s32.totalorder %v154, 1
    %vm159 = vcmp.eq.s32.totalorder %v155, 1
    %vm160 = vcmp.eq.s32.totalorder %v156, 1
    %vm161 = vcmp.eq.s32.totalorder %v157, 1
    %v162 = vsel %vm158, %v153, 0.0
    %v163 = vsel %vm159, %v152, 0.0
    %v164 = vsel %vm160, %v151, 0.0
    %v165 = vsel %vm161, %v150, 0.0
    %v166 = vrot.slane %v141, 1
    %v167 = vrot.slane %v142, 1
    %v168 = vrot.slane %v143, 1
    %v169 = vrot.slane %v144, 1
    %vm170 = vcmp.lt.s32.totalorder %v81, 7
    %v171 = vsel %vm170, %v168, %v169
    %v172 = vsel %vm170, %v167, %v168
    %v173 = vsel %vm170, %v166, %v167
    %v174 = vsel %vm170, %v169, %v166
    %v175 = vsel %vm137, 1, 0
    %v176 = vsel %vm138, 1, 0
    %v177 = vsel %vm139, 1, 0
    %v178 = vsel %vm140, 1, 0
    %vm179 = vcmp.eq.s32.totalorder %v175, 1
    %vm180 = vcmp.eq.s32.totalorder %v176, 1
    %vm181 = vcmp.eq.s32.totalorder %v177, 1
    %vm182 = vcmp.eq.s32.totalorder %v178, 1
    %v183 = vsel %vm179, %v173, 0.0
    %v184 = vsel %vm180, %v172, 0.0
    %v185 = vsel %vm181, %v171, 0.0
    %v186 = vsel %vm182, %v174, 0.0
    %v187 = vpack.c.bf16 %v142, %v141
    %v188 = vpack.c.bf16 %v144, %v143
    %v189 = vld [vmem:[#allocation5] sm:$0xff]
    %v190 = vld [vmem:[#allocation5 + $0x8] sm:$0xff]
    %v191 = vld [vmem:[#allocation5 + $0x10] sm:$0xff]
    %v192 = vld [vmem:[#allocation5 + $0x18] sm:$0xff]
    %v193 = vld [vmem:[#allocation5 + $0x20] sm:$0xff]
    %v194 = vld [vmem:[#allocation5 + $0x28] sm:$0xff]
    %v195 = vld [vmem:[#allocation5 + $0x30] sm:$0xff]
    %v196 = vld [vmem:[#allocation5 + $0x38] sm:$0xff]
    %v205 = vunpack.c.l.b16 %v189
    %v206 = vunpack.c.h.b16 %v189
    %v207 = vunpack.c.l.b16 %v190
    %v208 = vunpack.c.h.b16 %v190
    %v209 = vunpack.c.l.b16 %v191
    %v210 = vunpack.c.h.b16 %v191
    %v211 = vunpack.c.l.b16 %v192
    %v212 = vunpack.c.h.b16 %v192
    %v213 = vunpack.c.l.b16 %v193
    %v214 = vunpack.c.h.b16 %v193
    %v215 = vunpack.c.l.b16 %v194
    %v216 = vunpack.c.h.b16 %v194
    %v217 = vunpack.c.l.b16 %v195
    %v218 = vunpack.c.h.b16 %v195
    %v219 = vunpack.c.l.b16 %v196
    %v220 = vunpack.c.h.b16 %v196
    %v221 = vpack.c.b16 %v207, %v205
    %v222 = vpack.c.b16 %v208, %v206
    %v223 = vpack.c.b16 %v211, %v209
    %v224 = vpack.c.b16 %v212, %v210
    %v225 = vpack.c.b16 %v215, %v213
    %v226 = vpack.c.b16 %v216, %v214
    %v227 = vpack.c.b16 %v219, %v217
    %v228 = vpack.c.b16 %v220, %v218
    %vm237 = vcmask 523264
    %v239 = vsel %vm237, %v187, 0
    %v242 = vsel %vm237, %v188, 0
    %244 = vmatprep.subr.bf16.mxu0 %v222
    %245 = vmatpush1.bf16.msra.mxu0 %v221
    %246 = vmatprep.subr.bf16.mxu0 %v224
    %247 = vmatpush1.bf16.msra.mxu0 %v223
    %248 = vmatprep.subr.bf16.mxu0 %v226
    %249 = vmatpush1.bf16.msra.mxu0 %v225
    %250 = vmatprep.subr.bf16.mxu0 %v228
    %251 = vmatpush1.bf16.msra.mxu0 %v227
    %252 = vmatprep.subr.bf16.mxu0 0
    %253 = vmatpush1.bf16.msra.mxu0 0
    %254 = vmatprep.subr.bf16.mxu0 0
    %255 = vmatpush1.bf16.msra.mxu0 0
    %256 = vmatprep.subr.bf16.mxu0 0
    %257 = vmatpush1.bf16.msra.mxu0 0
    %258 = vmatprep.subr.bf16.mxu0 0
    %259 = vmatpush1.bf16.msra.mxu0 0
    %260 = vmatprep.subr.bf16.mxu0 0
    %261 = vmatpush1.bf16.msra.mxu0 0
    %262 = vmatprep.subr.bf16.mxu0 0
    %263 = vmatpush1.bf16.msra.mxu0 0
    %264 = vmatprep.subr.bf16.mxu0 0
    %265 = vmatpush1.bf16.msra.mxu0 0
    %266 = vmatprep.subr.bf16.mxu0 0
    %267 = vmatpush1.bf16.msra.mxu0 0
    %268 = vmatprep.subr.bf16.mxu0 0
    %269 = vmatpush1.bf16.msra.mxu0 0
    %270 = vmatprep.subr.bf16.mxu0 0
    %271 = vmatpush1.bf16.msra.mxu0 0
    %272 = vmatprep.subr.bf16.mxu0 0
    %273 = vmatpush1.bf16.msra.mxu0 0
    %274 = vmatprep.subr.bf16.mxu0 0
    %275 = vmatpush1.bf16.msra.mxu0 0
    %276 = vmatprep.mubr.bf16.mxu0 0
    %277 = vmatmul.mubr.bf16.gmra.mrb[0].mxu0 %v239
    %v278 = vpop.f32.mrb[0].mxu0
    %v279 = vadd.f32 0.0, %v278
    %v280 = vpop.f32.mrb[0].mxu0
    %v281 = vadd.f32 0.0, %v280
    %v282 = vpop.f32.mrb[0].mxu0
    %v283 = vadd.f32 0.0, %v282
    %v284 = vpop.f32.mrb[0].mxu0
    %v285 = vadd.f32 0.0, %v284
    %286 = vmatprep.mubr.bf16.mxu0 0
    %287 = vmatmul.mubr.bf16.gmra.mrb[0].mxu0 %v242
    %v288 = vpop.f32.mrb[0].mxu0
    %v289 = vadd.f32 0.0, %v288
    %v290 = vpop.f32.mrb[0].mxu0
    %v291 = vadd.f32 0.0, %v290
    %v292 = vpop.f32.mrb[0].mxu0
    %v293 = vadd.f32 0.0, %v292
    %v294 = vpop.f32.mrb[0].mxu0
    %v295 = vadd.f32 0.0, %v294
    %296 = vdwg.mxu0
    %v297 = vpack.c.bf16 %v163, %v162
    %v298 = vpack.c.bf16 %v165, %v164
    %v299 = vld [vmem:[#allocation7] sm:$0xf]
    %v300 = vld [vmem:[#allocation7 + $0x4] sm:$0xf]
    %v301 = vld [vmem:[#allocation7 + $0x8] sm:$0xf]
    %v302 = vld [vmem:[#allocation7 + $0xc] sm:$0xf]
    %v303 = vld [vmem:[#allocation7 + $0x10] sm:$0xf]
    %v304 = vld [vmem:[#allocation7 + $0x14] sm:$0xf]
    %v305 = vld [vmem:[#allocation7 + $0x18] sm:$0xf]
    %v306 = vld [vmem:[#allocation7 + $0x1c] sm:$0xf]
    %v307 = vpack.c.bf16 %v184, %v183
    %v308 = vpack.c.bf16 %v186, %v185
    %s309 = scalar_lea.vmem [#allocation7], 32
    %v310 = vld [vmem:[%s309] sm:$0xf]
    %v311 = vld [vmem:[%s309 + $0x4] sm:$0xf]
    %v312 = vld [vmem:[%s309 + $0x8] sm:$0xf]
    %v313 = vld [vmem:[%s309 + $0xc] sm:$0xf]
    %v314 = vld [vmem:[%s309 + $0x10] sm:$0xf]
    %v315 = vld [vmem:[%s309 + $0x14] sm:$0xf]
    %v316 = vld [vmem:[%s309 + $0x18] sm:$0xf]
    %v317 = vld [vmem:[%s309 + $0x1c] sm:$0xf]
    %v326 = vunpack.c.l.b16 %v310
    %v327 = vunpack.c.l.b16 %v311
    %v328 = vunpack.c.l.b16 %v312
    %v329 = vunpack.c.l.b16 %v313
    %v330 = vunpack.c.l.b16 %v314
    %v331 = vunpack.c.l.b16 %v315
    %v332 = vunpack.c.l.b16 %v316
    %v333 = vunpack.c.l.b16 %v317
    %v334 = vpack.c.b16 %v327, %v326
    %v335 = vpack.c.b16 %v329, %v328
    %v336 = vpack.c.b16 %v331, %v330
    %v337 = vpack.c.b16 %v333, %v332
    %v343 = vsel %vm237, %v307, 0
    %v346 = vsel %vm237, %v308, 0
    %348 = vmatprep.subr.bf16.mxu0 0
    %349 = vmatpush1.bf16.msra.mxu0 %v334
    %350 = vmatprep.subr.bf16.mxu0 0
    %351 = vmatpush1.bf16.msra.mxu0 %v335
    %352 = vmatprep.subr.bf16.mxu0 0
    %353 = vmatpush1.bf16.msra.mxu0 %v336
    %354 = vmatprep.subr.bf16.mxu0 0
    %355 = vmatpush1.bf16.msra.mxu0 %v337
    %356 = vmatprep.subr.bf16.mxu0 0
    %357 = vmatpush1.bf16.msra.mxu0 0
    %358 = vmatprep.subr.bf16.mxu0 0
    %359 = vmatpush1.bf16.msra.mxu0 0
    %360 = vmatprep.subr.bf16.mxu0 0
    %361 = vmatpush1.bf16.msra.mxu0 0
    %362 = vmatprep.subr.bf16.mxu0 0
    %363 = vmatpush1.bf16.msra.mxu0 0
    %364 = vmatprep.subr.bf16.mxu0 0
    %365 = vmatpush1.bf16.msra.mxu0 0
    %366 = vmatprep.subr.bf16.mxu0 0
    %367 = vmatpush1.bf16.msra.mxu0 0
    %368 = vmatprep.subr.bf16.mxu0 0
    %369 = vmatpush1.bf16.msra.mxu0 0
    %370 = vmatprep.subr.bf16.mxu0 0
    %371 = vmatpush1.bf16.msra.mxu0 0
    %372 = vmatprep.subr.bf16.mxu0 0
    %373 = vmatpush1.bf16.msra.mxu0 0
    %374 = vmatprep.subr.bf16.mxu0 0
    %375 = vmatpush1.bf16.msra.mxu0 0
    %376 = vmatprep.subr.bf16.mxu0 0
    %377 = vmatpush1.bf16.msra.mxu0 0
    %378 = vmatprep.subr.bf16.mxu0 0
    %379 = vmatpush1.bf16.msra.mxu0 0
    %380 = vmatprep.mubr.bf16.mxu0 0
    %381 = vmatmul.mubr.bf16.gmra.mrb[0].mxu0 %v343
    %v382 = vpop.f32.mrb[0].mxu0
    %v383 = vadd.f32 0.0, %v382
    %v384 = vpop.f32.mrb[0].mxu0
    %v385 = vpop.f32.mrb[0].mxu0
    %v386 = vadd.f32 0.0, %v385
    %v387 = vpop.f32.mrb[0].mxu0
    %388 = vmatprep.mubr.bf16.mxu0 0
    %389 = vmatmul.mubr.bf16.gmra.mrb[0].mxu0 %v346
    %v390 = vpop.f32.mrb[0].mxu0
    %v391 = vadd.f32 0.0, %v390
    %v392 = vpop.f32.mrb[0].mxu0
    %v393 = vpop.f32.mrb[0].mxu0
    %v394 = vadd.f32 0.0, %v393
    %v395 = vpop.f32.mrb[0].mxu0
    %396 = vdwg.mxu0
    %v405 = vunpack.c.l.b16 %v299
    %v406 = vunpack.c.l.b16 %v300
    %v407 = vunpack.c.l.b16 %v301
    %v408 = vunpack.c.l.b16 %v302
    %v409 = vunpack.c.l.b16 %v303
    %v410 = vunpack.c.l.b16 %v304
    %v411 = vunpack.c.l.b16 %v305
    %v412 = vunpack.c.l.b16 %v306
    %v413 = vpack.c.b16 %v406, %v405
    %v414 = vpack.c.b16 %v408, %v407
    %v415 = vpack.c.b16 %v410, %v409
    %v416 = vpack.c.b16 %v412, %v411
    %v422 = vsel %vm237, %v297, 0
    %v425 = vsel %vm237, %v298, 0
    %427 = vmatprep.subr.bf16.mxu0 0
    %428 = vmatpush1.bf16.msra.mxu0 %v413
    %429 = vmatprep.subr.bf16.mxu0 0
    %430 = vmatpush1.bf16.msra.mxu0 %v414
    %431 = vmatprep.subr.bf16.mxu0 0
    %432 = vmatpush1.bf16.msra.mxu0 %v415
    %433 = vmatprep.subr.bf16.mxu0 0
    %434 = vmatpush1.bf16.msra.mxu0 %v416
    %435 = vmatprep.subr.bf16.mxu0 0
    %436 = vmatpush1.bf16.msra.mxu0 0
    %437 = vmatprep.subr.bf16.mxu0 0
    %438 = vmatpush1.bf16.msra.mxu0 0
    %439 = vmatprep.subr.bf16.mxu0 0
    %440 = vmatpush1.bf16.msra.mxu0 0
    %441 = vmatprep.subr.bf16.mxu0 0
    %442 = vmatpush1.bf16.msra.mxu0 0
    %443 = vmatprep.subr.bf16.mxu0 0
    %444 = vmatpush1.bf16.msra.mxu0 0
    %445 = vmatprep.subr.bf16.mxu0 0
    %446 = vmatpush1.bf16.msra.mxu0 0
    %447 = vmatprep.subr.bf16.mxu0 0
    %448 = vmatpush1.bf16.msra.mxu0 0
    %449 = vmatprep.subr.bf16.mxu0 0
    %450 = vmatpush1.bf16.msra.mxu0 0
    %451 = vmatprep.subr.bf16.mxu0 0
    %452 = vmatpush1.bf16.msra.mxu0 0
    %453 = vmatprep.subr.bf16.mxu0 0
    %454 = vmatpush1.bf16.msra.mxu0 0
    %455 = vmatprep.subr.bf16.mxu0 0
    %456 = vmatpush1.bf16.msra.mxu0 0
    %457 = vmatprep.subr.bf16.mxu0 0
    %458 = vmatpush1.bf16.msra.mxu0 0
    %459 = vmatprep.mubr.bf16.mxu0 0
    %460 = vmatmul.mubr.bf16.gmra.mrb[0].mxu0 %v422
    %v461 = vpop.f32.mrb[0].mxu0
    %v462 = vadd.f32 %v383, %v461
    %v463 = vpop.f32.mrb[0].mxu0
    %v464 = vpop.f32.mrb[0].mxu0
    %v465 = vadd.f32 %v386, %v464
    %v466 = vpop.f32.mrb[0].mxu0
    %467 = vmatprep.mubr.bf16.mxu0 0
    %468 = vmatmul.mubr.bf16.gmra.mrb[0].mxu0 %v425
    %v469 = vpop.f32.mrb[0].mxu0
    %v470 = vadd.f32 %v391, %v469
    %v471 = vpop.f32.mrb[0].mxu0
    %v472 = vpop.f32.mrb[0].mxu0
    %v473 = vadd.f32 %v394, %v472
    %v474 = vpop.f32.mrb[0].mxu0
    %475 = vdwg.mxu0
    %v476 = vadd.f32 %v279, %v462
    %v477 = vadd.f32 %v283, %v465
    %v478 = vadd.f32 %v289, %v470
    %v479 = vadd.f32 %v293, %v473
    %v480 = vld [vmem:[%s4] sm:$0x1]
    %v482 = vlaneseq
    %v483 = vshrl.u32 %v482, 7
    %v484 = vsub.s32 0, %v483
    %v485 = vrot.slane %v480, %v484
    %v487 = vadd.f32 %v476, %v485
    %v488 = vadd.f32 %v477, %v485
    %v489 = vadd.f32 %v478, %v485
    %v490 = vadd.f32 %v479, %v485
    %v491 = vmax.f32 %v487, 0.0
    %v492 = vmax.f32 %v488, 0.0
    %v493 = vmax.f32 %v489, 0.0
    %v494 = vmax.f32 %v490, 0.0
    %v495 = vrot.slane %v491, 7
    %v496 = vrot.slane %v492, 7
    %v497 = vrot.slane %v493, 7
    %v498 = vrot.slane %v494, 7
    %v499 = vsel %vm149, %v497, %v498
    %v500 = vsel %vm149, %v496, %v497
    %v501 = vsel %vm149, %v495, %v496
    %v502 = vsel %vm149, %v498, %v495
    %v503 = vsel %vm158, %v502, 0.0
    %v504 = vsel %vm159, %v501, 0.0
    %v505 = vsel %vm160, %v500, 0.0
    %v506 = vsel %vm161, %v499, 0.0
    %v507 = vrot.slane %v491, 1
    %v508 = vrot.slane %v492, 1
    %v509 = vrot.slane %v493, 1
    %v510 = vrot.slane %v494, 1
    %v511 = vsel %vm170, %v509, %v510
    %v512 = vsel %vm170, %v508, %v509
    %v513 = vsel %vm170, %v507, %v508
    %v514 = vsel %vm170, %v510, %v507
    %v515 = vsel %vm179, %v513, 0.0
    %v516 = vsel %vm180, %v512, 0.0
    %v517 = vsel %vm181, %v511, 0.0
    %v518 = vsel %vm182, %v514, 0.0
    %v519 = vpack.c.bf16 %v504, %v503
    %v520 = vpack.c.bf16 %v506, %v505
    %v521 = vpack.c.bf16 %v492, %v491
    %v522 = vpack.c.bf16 %v494, %v493
    %v523 = vpack.c.bf16 %v516, %v515
    %v524 = vpack.c.bf16 %v518, %v517
    %v525 = vld [vmem:[#allocation8] sm:$0xf]
    %v526 = vld [vmem:[#allocation8 + $0x4] sm:$0xf]
    %v527 = vld [vmem:[#allocation8 + $0x8] sm:$0xf]
    %v528 = vld [vmem:[#allocation8 + $0xc] sm:$0xf]
    %v529 = vld [vmem:[#allocation8 + $0x10] sm:$0xf]
    %v530 = vld [vmem:[#allocation8 + $0x14] sm:$0xf]
    %v531 = vld [vmem:[#allocation8 + $0x18] sm:$0xf]
    %v532 = vld [vmem:[#allocation8 + $0x1c] sm:$0xf]
    %v533 = vld [vmem:[#allocation8 + $0x20] sm:$0xf]
    %v534 = vld [vmem:[#allocation8 + $0x24] sm:$0xf]
    %v535 = vld [vmem:[#allocation8 + $0x28] sm:$0xf]
    %v536 = vld [vmem:[#allocation8 + $0x2c] sm:$0xf]
    %v537 = vld [vmem:[#allocation8 + $0x30] sm:$0xf]
    %v538 = vld [vmem:[#allocation8 + $0x34] sm:$0xf]
    %v539 = vld [vmem:[#allocation8 + $0x38] sm:$0xf]
    %v540 = vld [vmem:[#allocation8 + $0x3c] sm:$0xf]
    %v541 = vld [vmem:[#allocation8 + $0x40] sm:$0xf]
    %v542 = vld [vmem:[#allocation8 + $0x44] sm:$0xf]
    %v543 = vld [vmem:[#allocation8 + $0x48] sm:$0xf]
    %v544 = vld [vmem:[#allocation8 + $0x4c] sm:$0xf]
    %v545 = vld [vmem:[#allocation8 + $0x50] sm:$0xf]
    %v546 = vld [vmem:[#allocation8 + $0x54] sm:$0xf]
    %v547 = vld [vmem:[#allocation8 + $0x58] sm:$0xf]
    %v548 = vld [vmem:[#allocation8 + $0x5c] sm:$0xf]
    %v549 = vld [vmem:[#allocation8 + $0x60] sm:$0xf]
    %v550 = vld [vmem:[#allocation8 + $0x64] sm:$0xf]
    %v551 = vld [vmem:[#allocation8 + $0x68] sm:$0xf]
    %v552 = vld [vmem:[#allocation8 + $0x6c] sm:$0xf]
    %v553 = vld [vmem:[#allocation8 + $0x70] sm:$0xf]
    %v554 = vld [vmem:[#allocation8 + $0x74] sm:$0xf]
    %v555 = vld [vmem:[#allocation8 + $0x78] sm:$0xf]
    %v556 = vld [vmem:[#allocation8 + $0x7c] sm:$0xf]
    %v557 = vld [vmem:[#allocation8 + $0x80] sm:$0xf]
    %v558 = vld [vmem:[#allocation8 + $0x84] sm:$0xf]
    %v559 = vld [vmem:[#allocation8 + $0x88] sm:$0xf]
    %v560 = vld [vmem:[#allocation8 + $0x8c] sm:$0xf]
    %v561 = vld [vmem:[#allocation8 + $0x90] sm:$0xf]
    %v562 = vld [vmem:[#allocation8 + $0x94] sm:$0xf]
    %v563 = vld [vmem:[#allocation8 + $0x98] sm:$0xf]
    %v564 = vld [vmem:[#allocation8 + $0x9c] sm:$0xf]
    %v565 = vld [vmem:[#allocation8 + $0xa0] sm:$0xf]
    %v566 = vld [vmem:[#allocation8 + $0xa4] sm:$0xf]
    %v567 = vld [vmem:[#allocation8 + $0xa8] sm:$0xf]
    %v568 = vld [vmem:[#allocation8 + $0xac] sm:$0xf]
    %v569 = vld [vmem:[#allocation8 + $0xb0] sm:$0xf]
    %v570 = vld [vmem:[#allocation8 + $0xb4] sm:$0xf]
    %v571 = vld [vmem:[#allocation8 + $0xb8] sm:$0xf]
    %v572 = vld [vmem:[#allocation8 + $0xbc] sm:$0xf]
    %v621 = vunpack.c.l.b16 %v525
    %v622 = vunpack.c.l.b16 %v526
    %v623 = vunpack.c.l.b16 %v527
    %v624 = vunpack.c.l.b16 %v528
    %v625 = vunpack.c.l.b16 %v529
    %v626 = vunpack.c.l.b16 %v530
    %v627 = vunpack.c.l.b16 %v531
    %v628 = vunpack.c.l.b16 %v532
    %v629 = vunpack.c.l.b16 %v533
    %v630 = vunpack.c.l.b16 %v534
    %v631 = vunpack.c.l.b16 %v535
    %v632 = vunpack.c.l.b16 %v536
    %v633 = vunpack.c.l.b16 %v537
    %v634 = vunpack.c.l.b16 %v538
    %v635 = vunpack.c.l.b16 %v539
    %v636 = vunpack.c.l.b16 %v540
    %v637 = vunpack.c.l.b16 %v541
    %v638 = vunpack.c.l.b16 %v542
    %v639 = vunpack.c.l.b16 %v543
    %v640 = vunpack.c.l.b16 %v544
    %v641 = vunpack.c.l.b16 %v545
    %v642 = vunpack.c.l.b16 %v546
    %v643 = vunpack.c.l.b16 %v547
    %v644 = vunpack.c.l.b16 %v548
    %v645 = vunpack.c.l.b16 %v549
    %v646 = vunpack.c.l.b16 %v550
    %v647 = vunpack.c.l.b16 %v551
    %v648 = vunpack.c.l.b16 %v552
    %v649 = vunpack.c.l.b16 %v553
    %v650 = vunpack.c.l.b16 %v554
    %v651 = vunpack.c.l.b16 %v555
    %v652 = vunpack.c.l.b16 %v556
    %v653 = vunpack.c.l.b16 %v557
    %v654 = vunpack.c.l.b16 %v558
    %v655 = vunpack.c.l.b16 %v559
    %v656 = vunpack.c.l.b16 %v560
    %v657 = vunpack.c.l.b16 %v561
    %v658 = vunpack.c.l.b16 %v562
    %v659 = vunpack.c.l.b16 %v563
    %v660 = vunpack.c.l.b16 %v564
    %v661 = vunpack.c.l.b16 %v565
    %v662 = vunpack.c.l.b16 %v566
    %v663 = vunpack.c.l.b16 %v567
    %v664 = vunpack.c.l.b16 %v568
    %v665 = vunpack.c.l.b16 %v569
    %v666 = vunpack.c.l.b16 %v570
    %v667 = vunpack.c.l.b16 %v571
    %v668 = vunpack.c.l.b16 %v572
    %v669 = vpack.c.b16 %v622, %v621
    %v670 = vpack.c.b16 %v624, %v623
    %v671 = vpack.c.b16 %v626, %v625
    %v672 = vpack.c.b16 %v628, %v627
    %v673 = vpack.c.b16 %v630, %v629
    %v674 = vpack.c.b16 %v632, %v631
    %v675 = vpack.c.b16 %v634, %v633
    %v676 = vpack.c.b16 %v636, %v635
    %v677 = vpack.c.b16 %v638, %v637
    %v678 = vpack.c.b16 %v640, %v639
    %v679 = vpack.c.b16 %v642, %v641
    %v680 = vpack.c.b16 %v644, %v643
    %v681 = vpack.c.b16 %v646, %v645
    %v682 = vpack.c.b16 %v648, %v647
    %v683 = vpack.c.b16 %v650, %v649
    %v684 = vpack.c.b16 %v652, %v651
    %v685 = vpack.c.b16 %v654, %v653
    %v686 = vpack.c.b16 %v656, %v655
    %v687 = vpack.c.b16 %v658, %v657
    %v688 = vpack.c.b16 %v660, %v659
    %v689 = vpack.c.b16 %v662, %v661
    %v690 = vpack.c.b16 %v664, %v663
    %v691 = vpack.c.b16 %v666, %v665
    %v692 = vpack.c.b16 %v668, %v667
    %717 = vmatprep.subr.bf16.mxu0 0
    %718 = vmatpush1.bf16.msra.mxu0 %v669
    %719 = vmatprep.subr.bf16.mxu0 0
    %720 = vmatpush1.bf16.msra.mxu0 %v670
    %721 = vmatprep.subr.bf16.mxu0 0
    %722 = vmatpush1.bf16.msra.mxu0 %v671
    %723 = vmatprep.subr.bf16.mxu0 0
    %724 = vmatpush1.bf16.msra.mxu0 %v672
    %725 = vmatprep.subr.bf16.mxu0 0
    %726 = vmatpush1.bf16.msra.mxu0 %v673
    %727 = vmatprep.subr.bf16.mxu0 0
    %728 = vmatpush1.bf16.msra.mxu0 %v674
    %729 = vmatprep.subr.bf16.mxu0 0
    %730 = vmatpush1.bf16.msra.mxu0 %v675
    %731 = vmatprep.subr.bf16.mxu0 0
    %732 = vmatpush1.bf16.msra.mxu0 %v676
    %733 = vmatprep.subr.bf16.mxu0 0
    %734 = vmatpush1.bf16.msra.mxu0 %v677
    %735 = vmatprep.subr.bf16.mxu0 0
    %736 = vmatpush1.bf16.msra.mxu0 %v678
    %737 = vmatprep.subr.bf16.mxu0 0
    %738 = vmatpush1.bf16.msra.mxu0 %v679
    %739 = vmatprep.subr.bf16.mxu0 0
    %740 = vmatpush1.bf16.msra.mxu0 %v680
    %741 = vmatprep.subr.bf16.mxu0 0
    %742 = vmatpush1.bf16.msra.mxu0 %v681
    %743 = vmatprep.subr.bf16.mxu0 0
    %744 = vmatpush1.bf16.msra.mxu0 %v682
    %745 = vmatprep.subr.bf16.mxu0 0
    %746 = vmatpush1.bf16.msra.mxu0 %v683
    %747 = vmatprep.subr.bf16.mxu0 0
    %748 = vmatpush1.bf16.msra.mxu0 %v684
    %749 = vmatprep.mubr.bf16.mxu0 %v521
    %750 = vmatmul.mubr.bf16.gmra.mrb[0].mxu0 %v519
    %v751 = vpop.f32.mrb[0].mxu0
    %v752 = vadd.f32 0.0, %v751
    %v753 = vpop.f32.mrb[0].mxu0
    %v754 = vpop.f32.mrb[0].mxu0
    %v755 = vadd.f32 0.0, %v754
    %v756 = vpop.f32.mrb[0].mxu0
    %757 = vmatprep.mubr.bf16.mxu0 %v522
    %758 = vmatmul.mubr.bf16.gmra.mrb[0].mxu0 %v520
    %v759 = vpop.f32.mrb[0].mxu0
    %v760 = vadd.f32 0.0, %v759
    %v761 = vpop.f32.mrb[0].mxu0
    %v762 = vpop.f32.mrb[0].mxu0
    %v763 = vadd.f32 0.0, %v762
    %v764 = vpop.f32.mrb[0].mxu0
    %765 = vdwg.mxu0
    %766 = vmatprep.subr.bf16.mxu0 0
    %767 = vmatpush1.bf16.msra.mxu0 %v685
    %768 = vmatprep.subr.bf16.mxu0 0
    %769 = vmatpush1.bf16.msra.mxu0 %v686
    %770 = vmatprep.subr.bf16.mxu0 0
    %771 = vmatpush1.bf16.msra.mxu0 %v687
    %772 = vmatprep.subr.bf16.mxu0 0
    %773 = vmatpush1.bf16.msra.mxu0 %v688
    %774 = vmatprep.subr.bf16.mxu0 0
    %775 = vmatpush1.bf16.msra.mxu0 %v689
    %776 = vmatprep.subr.bf16.mxu0 0
    %777 = vmatpush1.bf16.msra.mxu0 %v690
    %778 = vmatprep.subr.bf16.mxu0 0
    %779 = vmatpush1.bf16.msra.mxu0 %v691
    %780 = vmatprep.subr.bf16.mxu0 0
    %781 = vmatpush1.bf16.msra.mxu0 %v692
    %782 = vmatprep.subr.bf16.mxu0 0
    %783 = vmatpush1.bf16.msra.mxu0 0
    %784 = vmatprep.subr.bf16.mxu0 0
    %785 = vmatpush1.bf16.msra.mxu0 0
    %786 = vmatprep.subr.bf16.mxu0 0
    %787 = vmatpush1.bf16.msra.mxu0 0
    %788 = vmatprep.subr.bf16.mxu0 0
    %789 = vmatpush1.bf16.msra.mxu0 0
    %790 = vmatprep.subr.bf16.mxu0 0
    %791 = vmatpush1.bf16.msra.mxu0 0
    %792 = vmatprep.subr.bf16.mxu0 0
    %793 = vmatpush1.bf16.msra.mxu0 0
    %794 = vmatprep.subr.bf16.mxu0 0
    %795 = vmatpush1.bf16.msra.mxu0 0
    %796 = vmatprep.subr.bf16.mxu0 0
    %797 = vmatpush1.bf16.msra.mxu0 0
    %798 = vmatprep.mubr.bf16.mxu0 0
    %799 = vmatmul.mubr.bf16.gmra.mrb[0].mxu0 %v523
    %v800 = vpop.f32.mrb[0].mxu0
    %v801 = vadd.f32 %v752, %v800
    %v802 = vpop.f32.mrb[0].mxu0
    %v803 = vpop.f32.mrb[0].mxu0
    %v804 = vadd.f32 %v755, %v803
    %v805 = vpop.f32.mrb[0].mxu0
    %806 = vmatprep.mubr.bf16.mxu0 0
    %807 = vmatmul.mubr.bf16.gmra.mrb[0].mxu0 %v524
    %v808 = vpop.f32.mrb[0].mxu0
    %v809 = vadd.f32 %v760, %v808
    %v810 = vpop.f32.mrb[0].mxu0
    %v811 = vpop.f32.mrb[0].mxu0
    %v812 = vadd.f32 %v763, %v811
    %v813 = vpop.f32.mrb[0].mxu0
    %814 = vdwg.mxu0
    %v815 = vadd.f32 %v281, %v801
    %v816 = vadd.f32 %v285, %v804
    %v817 = vadd.f32 %v291, %v809
    %v818 = vadd.f32 %v295, %v812
    %v819 = vld [vmem:[%s5] sm:$0x1]
    %v821 = vlaneseq
    %v822 = vshrl.u32 %v821, 7
    %v823 = vsub.s32 0, %v822
    %v824 = vrot.slane %v819, %v823
    %v826 = vadd.f32 %v815, %v824
    %v827 = vadd.f32 %v816, %v824
    %v828 = vadd.f32 %v817, %v824
    %v829 = vadd.f32 %v818, %v824
    %830 = vst [vmem:[#allocation10] sm:$0xff] %v826
    %831 = vst [vmem:[#allocation10 + $0x8] sm:$0xff] %v827
    %832 = vst [vmem:[#allocation10 + $0x10] sm:$0xff] %v828
    %833 = vst [vmem:[#allocation10 + $0x18] sm:$0xff] %v829
    // Predicated region
    $region42: #{tpu_custom_call.1} parent=1 // pred_check
      _
    $region43: #{tpu_custom_call.1} parent=1 // pred_check_branch
      %835 = sbr.rel (0) target = $region45
    $region44: #{tpu_custom_call.1} parent=1 // pred_region
      %s837 = ssub.s32 512, 512
      %838 = vsyncadd [#allocation4], %s837
      %s839 = sshll.u32 [#allocation10], 4
      %s840 = int_to_ptr.vmem [resolvable:$true] %s839
      %845 = dma.vmem_to_hbm [thread:$0]  %s840, 512, %s6, [#allocation4], 128, 128, 8
    $region45: #{tpu_custom_call.1} parent=1 // pred_fallthru
      _
    // Predicated region
    $region46: #{tpu_custom_call.1} parent=1 // pred_check
      _
    $region47: #{tpu_custom_call.1} parent=1 // pred_check_branch
      %847 = sbr.rel (0) target = $region49
    $region48: #{tpu_custom_call.1} parent=1 // pred_region
      %848 = dma.done [#allocation4], 512
    $region49: #{tpu_custom_call.1} parent=1 // pred_fallthru
      _
    %849 = vsyncpa [#allocation3], 1
    %850 = vsyncpa [#allocation6], 1
    %851 = vsyncpa [#allocation9], 1
    %852 = vsyncpa [#allocation4], 1

</llo_original>
